<compile_context>
chip_gen: v5e
topology: v5e:2x2
jax: 0.10.0
libtpu: 0.0.40
codegen_flags: <defaults>
</compile_context>

<pallas_src>
import jax
import jax.numpy as jnp
from jax.experimental import pallas as pl
from jax.experimental.pallas import tpu as pltpu


def _round_up(x, m):
    return ((x + m - 1) // m) * m


def actor_kernel(x_ref, w1_ref, b1_ref, w2_ref, b2_ref, wh_ref, bh_ref, out_ref):
    """One batch tile of the fused Actor MLP.

    x_ref   : [TB, S]  state tile (streamed per grid step)
    w1_ref  : [S, H]   fc1 weight   (VMEM-resident across the whole grid)
    b1_ref  : [1, H]   fc1 bias
    w2_ref  : [H, H]   fc2 weight
    b2_ref  : [1, H]   fc2 bias
    wh_ref  : [H, HP]  fused + lane-padded head weight  [Wmu | Wls | 0-pad]
    bh_ref  : [1, HP]  fused + lane-padded head bias
    out_ref : [TB, HP] fused, lane-dense output slab
    """
    x = x_ref[...]

    # fc1 + relu
    h1 = jnp.dot(x, w1_ref[...], preferred_element_type=jnp.float32) + b1_ref[...]
    h1 = jnp.maximum(h1, 0.0)

    # fc2 + relu
    h2 = jnp.dot(h1, w2_ref[...], preferred_element_type=jnp.float32) + b2_ref[...]
    h2 = jnp.maximum(h2, 0.0)

    # fused mu / log_std head -> single lane-dense store
    out_ref[...] = (jnp.dot(h2, wh_ref[...], preferred_element_type=jnp.float32)
                    + bh_ref[...]).astype(out_ref.dtype)


def actor_forward(state, params, *, batch_tile=256):
    """Fused Actor forward pass as a single batch-tiled pallas_call.

    state:  [B, state_dim] float32
    params: dict with w1 [S,H], b1 [1,H], w2 [H,H], b2 [1,H],
            wmu [H,A], bmu [1,A], wls [H,A], bls [1,A]
    returns (mu [B,A], log_std [B,A])
    """
    B, S = state.shape
    H = params["w1"].shape[1]
    A = params["wmu"].shape[1]

    # --- fuse + lane-pad the two heads into one [H, HP] matmul -------------
    HP = _round_up(2 * A, 128)  # lane-dense output width (unmasked stores)
    w_heads = jnp.concatenate([params["wmu"], params["wls"]], axis=1)
    b_heads = jnp.concatenate([params["bmu"], params["bls"]], axis=1)
    if HP != 2 * A:
        w_heads = jnp.pad(w_heads, ((0, 0), (0, HP - 2 * A)))
        b_heads = jnp.pad(b_heads, ((0, 0), (0, HP - 2 * A)))

    # --- batch tiling: pad B up so every grid step sees a full tile --------
    TB = min(batch_tile, _round_up(B, 8))       # sublane-aligned batch tile
    B_pad = _round_up(B, TB)
    x = state if B_pad == B else jnp.pad(state, ((0, B_pad - B), (0, 0)))

    grid = (B_pad // TB,)
    resident = lambda i: (0, 0)  # weights pinned in VMEM for all grid steps

    flops = 2 * B_pad * (S * H + H * H + H * HP)
    bytes_accessed = 4 * (B_pad * S + S * H + H + H * H + H
                          + H * HP + HP + B_pad * HP)

    out = pl.pallas_call(
        actor_kernel,
        out_shape=jax.ShapeDtypeStruct((B_pad, HP), jnp.float32),
        grid=grid,
        in_specs=[
            pl.BlockSpec((TB, S), lambda i: (i, 0)),   # state tile streams
            pl.BlockSpec((S, H), resident),            # fc1 W
            pl.BlockSpec((1, H), resident),            # fc1 b
            pl.BlockSpec((H, H), resident),            # fc2 W
            pl.BlockSpec((1, H), resident),            # fc2 b
            pl.BlockSpec((H, HP), resident),           # fused head W
            pl.BlockSpec((1, HP), resident),           # fused head b
        ],
        out_specs=pl.BlockSpec((TB, HP), lambda i: (i, 0)),
        compiler_params=pltpu.CompilerParams(
            dimension_semantics=("parallel",)),
        cost_estimate=pl.CostEstimate(
            flops=flops, transcendentals=0, bytes_accessed=bytes_accessed),
    )(x, params["w1"], params["b1"], params["w2"], params["b2"],
      w_heads, b_heads)

    # Split the fused slab back into the two heads (drop batch + lane padding).
    mu = out[:B, :A]
    log_std = out[:B, A:2 * A]
    return mu, log_std


def init_actor_params(key, state_dim, action_dim, hidden_size):
    """Deterministic init mimicking PyTorch nn.Linear default
    (U[-1/sqrt(fan_in), +1/sqrt(fan_in)]). Weights are stored as [in, out]
    so the kernel can do x @ W directly."""
    def linear(key, fan_in, fan_out):
        kw, kb = jax.random.split(key)
        bound = 1.0 / jnp.sqrt(jnp.float32(fan_in))
        w = jax.random.uniform(kw, (fan_in, fan_out), jnp.float32, -bound, bound)
        b = jax.random.uniform(kb, (1, fan_out), jnp.float32, -bound, bound)
        return w, b

    k1, k2, k3, k4 = jax.random.split(key, 4)
    w1, b1 = linear(k1, state_dim, hidden_size)
    w2, b2 = linear(k2, hidden_size, hidden_size)
    wmu, bmu = linear(k3, hidden_size, action_dim)
    wls, bls = linear(k4, hidden_size, action_dim)
    return dict(w1=w1, b1=b1, w2=w2, b2=b2,
                wmu=wmu, bmu=bmu, wls=wls, bls=bls)


def actor_forward_ref(state, params):
    """Pure-JAX reference for correctness checking."""
    h1 = jnp.maximum(state @ params["w1"] + params["b1"], 0.0)
    h2 = jnp.maximum(h1 @ params["w2"] + params["b2"], 0.0)
    mu = h2 @ params["wmu"] + params["bmu"]
    log_std = h2 @ params["wls"] + params["bls"]
    return mu, log_std


if __name__ == "__main__":
    # B is not a multiple of 128 (exercises the tile-size / padding logic);
    # hidden=256 matches the PyTorch module's default width.
    B, STATE_DIM, HIDDEN, ACTION_DIM = 200, 16, 256, 8

    key = jax.random.PRNGKey(0)
    k_state, k_params = jax.random.split(key)

    state = jax.random.normal(k_state, (B, STATE_DIM), dtype=jnp.float32)
    params = init_actor_params(k_params, STATE_DIM, ACTION_DIM, HIDDEN)

    mu, log_std = jax.jit(actor_forward)(state, params)
    jax.block_until_ready((mu, log_std))

    # Verify against the pure-JAX reference.
    mu_ref, log_std_ref = actor_forward_ref(state, params)
    assert mu.shape == (B, ACTION_DIM) and log_std.shape == (B, ACTION_DIM)
    assert jnp.allclose(mu, mu_ref, atol=1e-4, rtol=1e-4)
    assert jnp.allclose(log_std, log_std_ref, atol=1e-4, rtol=1e-4)

    print("KERNEL_OK")
</pallas_src>

<mosaic_0001>
module attributes {stable_mosaic.version = 11 : i64} {
  func.func @actor_kernel(%arg0: i32, %arg1: memref<200x16xf32, #tpu.memory_space<vmem>>, %arg2: memref<16x256xf32, #tpu.memory_space<vmem>>, %arg3: memref<1x256xf32, #tpu.memory_space<vmem>>, %arg4: memref<256x256xf32, #tpu.memory_space<vmem>>, %arg5: memref<1x256xf32, #tpu.memory_space<vmem>>, %arg6: memref<256x128xf32, #tpu.memory_space<vmem>>, %arg7: memref<1x128xf32, #tpu.memory_space<vmem>>, %arg8: memref<200x128xf32, #tpu.memory_space<vmem>>) attributes {dimension_semantics = [#tpu.dimension_semantics<parallel>], iteration_bounds = array<i64: 1>, scalar_prefetch = 0 : i64, scratch_operands = 0 : i64, tpu.core_type = #tpu.core_type<tc>, window_params = [{transform_indices = @transform_0, window_bounds = array<i64: 200, 16>}, {pipeline_mode = #tpu.pipeline_mode<synchronous>, transform_indices = @transform_1, window_bounds = array<i64: 16, 256>}, {pipeline_mode = #tpu.pipeline_mode<synchronous>, transform_indices = @transform_2, window_bounds = array<i64: 1, 256>}, {pipeline_mode = #tpu.pipeline_mode<synchronous>, transform_indices = @transform_3, window_bounds = array<i64: 256, 256>}, {pipeline_mode = #tpu.pipeline_mode<synchronous>, transform_indices = @transform_4, window_bounds = array<i64: 1, 256>}, {pipeline_mode = #tpu.pipeline_mode<synchronous>, transform_indices = @transform_5, window_bounds = array<i64: 256, 128>}, {pipeline_mode = #tpu.pipeline_mode<synchronous>, transform_indices = @transform_6, window_bounds = array<i64: 1, 128>}, {transform_indices = @transform_7, window_bounds = array<i64: 200, 128>}]} {
    %c0 = arith.constant 0 : index
    %c0_0 = arith.constant 0 : index
    %0 = vector.load %arg1[%c0, %c0_0] : memref<200x16xf32, #tpu.memory_space<vmem>>, vector<200x16xf32>
    %c0_1 = arith.constant 0 : index
    %c0_2 = arith.constant 0 : index
    %1 = vector.load %arg2[%c0_1, %c0_2] : memref<16x256xf32, #tpu.memory_space<vmem>>, vector<16x256xf32>
    %cst = arith.constant dense<0.000000e+00> : vector<200x256xf32>
    %2 = tpu.matmul %0, %1, %cst {dimension_numbers = #tpu.dot_dimension_numbers<[1], [0], [0], [1], [0, 0, 1, 1], [], []>} : vector<200x16xf32>, vector<16x256xf32>, vector<200x256xf32> -> vector<200x256xf32>
    %c0_3 = arith.constant 0 : index
    %c0_4 = arith.constant 0 : index
    %3 = vector.load %arg3[%c0_3, %c0_4] : memref<1x256xf32, #tpu.memory_space<vmem>>, vector<1x256xf32>
    %4 = vector.broadcast %3 : vector<1x256xf32> to vector<200x256xf32>
    %5 = arith.addf %2, %4 : vector<200x256xf32>
    %cst_5 = arith.constant 0.000000e+00 : f32
    %6 = vector.broadcast %cst_5 : f32 to vector<200x256xf32>
    %7 = arith.maximumf %5, %6 : vector<200x256xf32>
    %c0_6 = arith.constant 0 : index
    %c0_7 = arith.constant 0 : index
    %8 = vector.load %arg4[%c0_6, %c0_7] : memref<256x256xf32, #tpu.memory_space<vmem>>, vector<256x256xf32>
    %cst_8 = arith.constant dense<0.000000e+00> : vector<200x256xf32>
    %9 = tpu.matmul %7, %8, %cst_8 {dimension_numbers = #tpu.dot_dimension_numbers<[1], [0], [0], [1], [0, 0, 1, 1], [], []>} : vector<200x256xf32>, vector<256x256xf32>, vector<200x256xf32> -> vector<200x256xf32>
    %c0_9 = arith.constant 0 : index
    %c0_10 = arith.constant 0 : index
    %10 = vector.load %arg5[%c0_9, %c0_10] : memref<1x256xf32, #tpu.memory_space<vmem>>, vector<1x256xf32>
    %11 = vector.broadcast %10 : vector<1x256xf32> to vector<200x256xf32>
    %12 = arith.addf %9, %11 : vector<200x256xf32>
    %cst_11 = arith.constant 0.000000e+00 : f32
    %13 = vector.broadcast %cst_11 : f32 to vector<200x256xf32>
    %14 = arith.maximumf %12, %13 : vector<200x256xf32>
    %c0_12 = arith.constant 0 : index
    %c0_13 = arith.constant 0 : index
    %15 = vector.load %arg6[%c0_12, %c0_13] : memref<256x128xf32, #tpu.memory_space<vmem>>, vector<256x128xf32>
    %cst_14 = arith.constant dense<0.000000e+00> : vector<200x128xf32>
    %16 = tpu.matmul %14, %15, %cst_14 {dimension_numbers = #tpu.dot_dimension_numbers<[1], [0], [0], [1], [0, 0, 1, 1], [], []>} : vector<200x256xf32>, vector<256x128xf32>, vector<200x128xf32> -> vector<200x128xf32>
    %c0_15 = arith.constant 0 : index
    %c0_16 = arith.constant 0 : index
    %17 = vector.load %arg7[%c0_15, %c0_16] : memref<1x128xf32, #tpu.memory_space<vmem>>, vector<1x128xf32>
    %18 = vector.broadcast %17 : vector<1x128xf32> to vector<200x128xf32>
    %19 = arith.addf %16, %18 : vector<200x128xf32>
    %c0_17 = arith.constant 0 : index
    %c0_18 = arith.constant 0 : index
    %20 = vector.load %arg8[%c0_17, %c0_18] : memref<200x128xf32, #tpu.memory_space<vmem>>, vector<200x128xf32>
    tpu.vector_store %arg8[%c0_17, %c0_18], %19 {strides = array<i32>} : memref<200x128xf32, #tpu.memory_space<vmem>>, vector<200x128xf32>,
    return
  }
  func.func @transform_0(%arg0: i32) -> (i32, i32) {
    %c0_i32 = arith.constant 0 : i32
    %c0_i32_0 = arith.constant 0 : i32
    return %arg0, %c0_i32 : i32, i32
  }
  func.func @transform_1(%arg0: i32) -> (i32, i32) {
    %c0_i32 = arith.constant 0 : i32
    %c0_i32_0 = arith.constant 0 : i32
    %c0_i32_1 = arith.constant 0 : i32
    return %c0_i32, %c0_i32_0 : i32, i32
  }
  func.func @transform_2(%arg0: i32) -> (i32, i32) {
    %c0_i32 = arith.constant 0 : i32
    %c0_i32_0 = arith.constant 0 : i32
    %c0_i32_1 = arith.constant 0 : i32
    return %c0_i32, %c0_i32_0 : i32, i32
  }
  func.func @transform_3(%arg0: i32) -> (i32, i32) {
    %c0_i32 = arith.constant 0 : i32
    %c0_i32_0 = arith.constant 0 : i32
    %c0_i32_1 = arith.constant 0 : i32
    return %c0_i32, %c0_i32_0 : i32, i32
  }
  func.func @transform_4(%arg0: i32) -> (i32, i32) {
    %c0_i32 = arith.constant 0 : i32
    %c0_i32_0 = arith.constant 0 : i32
    %c0_i32_1 = arith.constant 0 : i32
    return %c0_i32, %c0_i32_0 : i32, i32
  }
  func.func @transform_5(%arg0: i32) -> (i32, i32) {
    %c0_i32 = arith.constant 0 : i32
    %c0_i32_0 = arith.constant 0 : i32
    %c0_i32_1 = arith.constant 0 : i32
    return %c0_i32, %c0_i32_0 : i32, i32
  }
  func.func @transform_6(%arg0: i32) -> (i32, i32) {
    %c0_i32 = arith.constant 0 : i32
    %c0_i32_0 = arith.constant 0 : i32
    %c0_i32_1 = arith.constant 0 : i32
    return %c0_i32, %c0_i32_0 : i32, i32
  }
  func.func @transform_7(%arg0: i32) -> (i32, i32) {
    %c0_i32 = arith.constant 0 : i32
    %c0_i32_0 = arith.constant 0 : i32
    return %arg0, %c0_i32 : i32, i32
  }
}

</mosaic_0001>

<llo_original>
// kernel: actor_forward.1
$region0: #{actor_forward.1}
  #allocation0 [shape = 'u32[]', space=smem, size = 0x4, offset = 0x4, fixed_abs, tag = 'smem constant byte address 0x4 - core index']
  #allocation1 [shape = 'u32[72,128]{1,0:T(1,128)}', space=vmem, size = 0x9000, scoped, tag = 'internal scratch']
  %s0 = inlined_call_operand.vmem [shape: f32[200,16], index: 0, kind: input, shape index: {}]
  %s1 = inlined_call_operand.vmem [shape: f32[16,256], index: 1, kind: input, shape index: {}]
  %s2 = inlined_call_operand.vmem [shape: f32[1,256], index: 2, kind: input, shape index: {}]
  %s3 = inlined_call_operand.vmem [shape: f32[256,256], index: 3, kind: input, shape index: {}]
  %s4 = inlined_call_operand.vmem [shape: f32[1,256], index: 4, kind: input, shape index: {}]
  %s5 = inlined_call_operand.vmem [shape: f32[256,128], index: 5, kind: input, shape index: {}]
  %s6 = inlined_call_operand.vmem [shape: f32[1,128], index: 6, kind: input, shape index: {}]
  %s7 = inlined_call_operand.vmem [shape: f32[200,128], index: 7, kind: output, shape index: {}]
  %s8 = sld [smem:[#allocation0]]
  $region38: #{actor_forward.1} parent=0
    _
  %s10 = ssub.s32 1, %s8
  %s11 = scalar_select 0, %s10, %s8
  // Predicated region
  $region2: #{actor_forward.1} parent=0 // pred_check
    _
  $region3: #{actor_forward.1} parent=0 // pred_check_branch
    %13 = sbr.rel (0) target = $region5
  $region4: #{actor_forward.1} parent=0 // pred_region
    _
  $region5: #{actor_forward.1} parent=0 // pred_fallthru
    _
  // Predicated region
  $region6: #{actor_forward.1} parent=0 // pred_check
    _
  $region7: #{actor_forward.1} parent=0 // pred_check_branch
    %15 = sbr.rel (0) target = $region9
  $region8: #{actor_forward.1} parent=0 // pred_region
    _
  $region9: #{actor_forward.1} parent=0 // pred_fallthru
    _
  // Predicated region
  $region10: #{actor_forward.1} parent=0 // pred_check
    _
  $region11: #{actor_forward.1} parent=0 // pred_check_branch
    %17 = sbr.rel (0) target = $region13
  $region12: #{actor_forward.1} parent=0 // pred_region
    _
  $region13: #{actor_forward.1} parent=0 // pred_fallthru
    _
  // Predicated region
  $region14: #{actor_forward.1} parent=0 // pred_check
    _
  $region15: #{actor_forward.1} parent=0 // pred_check_branch
    %19 = sbr.rel (0) target = $region17
  $region16: #{actor_forward.1} parent=0 // pred_region
    _
  $region17: #{actor_forward.1} parent=0 // pred_fallthru
    _
  // Predicated region
  $region18: #{actor_forward.1} parent=0 // pred_check
    _
  $region19: #{actor_forward.1} parent=0 // pred_check_branch
    %21 = sbr.rel (0) target = $region21
  $region20: #{actor_forward.1} parent=0 // pred_region
    _
  $region21: #{actor_forward.1} parent=0 // pred_fallthru
    _
  // Predicated region
  $region22: #{actor_forward.1} parent=0 // pred_check
    _
  $region23: #{actor_forward.1} parent=0 // pred_check_branch
    %23 = sbr.rel (0) target = $region25
  $region24: #{actor_forward.1} parent=0 // pred_region
    _
  $region25: #{actor_forward.1} parent=0 // pred_fallthru
    _
  // Predicated region
  $region26: #{actor_forward.1} parent=0 // pred_check
    _
  $region27: #{actor_forward.1} parent=0 // pred_check_branch
    %25 = sbr.rel (0) target = $region29
  $region28: #{actor_forward.1} parent=0 // pred_region
    _
  $region29: #{actor_forward.1} parent=0 // pred_fallthru
    _
  %v26 = vld [vmem:[%s0] sm:$0xff]
  %v27 = vld [vmem:[%s0 + $0x8] sm:$0xff]
  %v28 = vld [vmem:[%s0 + $0x10] sm:$0xff]
  %v29 = vld [vmem:[%s0 + $0x18] sm:$0xff]
  %v30 = vld [vmem:[%s0 + $0x20] sm:$0xff]
  %v31 = vld [vmem:[%s0 + $0x28] sm:$0xff]
  %v32 = vld [vmem:[%s0 + $0x30] sm:$0xff]
  %v33 = vld [vmem:[%s0 + $0x38] sm:$0xff]
  %v34 = vld [vmem:[%s0 + $0x40] sm:$0xff]
  %v35 = vld [vmem:[%s0 + $0x48] sm:$0xff]
  %v36 = vld [vmem:[%s0 + $0x50] sm:$0xff]
  %v37 = vld [vmem:[%s0 + $0x58] sm:$0xff]
  %v38 = vld [vmem:[%s0 + $0x60] sm:$0xff]
  %v39 = vld [vmem:[%s0 + $0x68] sm:$0xff]
  %v40 = vld [vmem:[%s0 + $0x70] sm:$0xff]
  %v41 = vld [vmem:[%s0 + $0x78] sm:$0xff]
  %v42 = vld [vmem:[%s0 + $0x80] sm:$0xff]
  %v43 = vld [vmem:[%s0 + $0x88] sm:$0xff]
  %v44 = vld [vmem:[%s0 + $0x90] sm:$0xff]
  %v45 = vld [vmem:[%s0 + $0x98] sm:$0xff]
  %v46 = vld [vmem:[%s0 + $0xa0] sm:$0xff]
  %v47 = vld [vmem:[%s0 + $0xa8] sm:$0xff]
  %v48 = vld [vmem:[%s0 + $0xb0] sm:$0xff]
  %v49 = vld [vmem:[%s0 + $0xb8] sm:$0xff]
  %v50 = vld [vmem:[%s0 + $0xc0] sm:$0xff]
  %v51 = vld [vmem:[%s1] sm:$0xff]
  %v52 = vld [vmem:[%s1 + $0x8] sm:$0xff]
  %v53 = vld [vmem:[%s1 + $0x10] sm:$0xff]
  %v54 = vld [vmem:[%s1 + $0x18] sm:$0xff]
  %v55 = vld [vmem:[%s2] sm:$0x3]
  %v57 = vperm.slane %v55, 0
  %v58 = vperm.slane %v55, 1
  %vm61 = vcmask 130048
  %v63 = vsel %vm61, %v26, 0
  %v66 = vsel %vm61, %v27, 0
  %v69 = vsel %vm61, %v28, 0
  %v72 = vsel %vm61, %v29, 0
  %v75 = vsel %vm61, %v30, 0
  %v78 = vsel %vm61, %v31, 0
  %v81 = vsel %vm61, %v32, 0
  %v84 = vsel %vm61, %v33, 0
  %v87 = vsel %vm61, %v34, 0
  %v90 = vsel %vm61, %v35, 0
  %v93 = vsel %vm61, %v36, 0
  %v96 = vsel %vm61, %v37, 0
  %v99 = vsel %vm61, %v38, 0
  %v102 = vsel %vm61, %v39, 0
  %v105 = vsel %vm61, %v40, 0
  %v108 = vsel %vm61, %v41, 0
  %v111 = vsel %vm61, %v42, 0
  %v114 = vsel %vm61, %v43, 0
  %v117 = vsel %vm61, %v44, 0
  %v120 = vsel %vm61, %v45, 0
  %v123 = vsel %vm61, %v46, 0
  %v126 = vsel %vm61, %v47, 0
  %v129 = vsel %vm61, %v48, 0
  %v132 = vsel %vm61, %v49, 0
  %v135 = vsel %vm61, %v50, 0
  %137 = vmatpush.msra.mxu0 0.0
  %138 = vmatpush.msra.mxu0 0.0
  %139 = vmatpush.msra.mxu0 0.0
  %140 = vmatpush.msra.mxu0 0.0
  %141 = vmatpush.msra.mxu0 0.0
  %142 = vmatpush.msra.mxu0 0.0
  %143 = vmatpush.msra.mxu0 0.0
  %144 = vmatpush.msra.mxu0 0.0
  %145 = vmatpush.msra.mxu0 0.0
  %146 = vmatpush.msra.mxu0 0.0
  %147 = vmatpush.msra.mxu0 0.0
  %148 = vmatpush.msra.mxu0 0.0
  %149 = vmatpush.msra.mxu0 0.0
  %150 = vmatpush.msra.mxu0 0.0
  %151 = vmatpush.msra.mxu0 %v53
  %152 = vmatpush.msra.mxu0 %v51
  %153 = vmatmul.f32.gmra.mxu0 %v63
  %v154 = vpop.f32.mrf.mxu0
  %v155 = vadd.f32 %v57, %v154
  %156 = vmatmul.f32.gmra.mxu0 %v66
  %v157 = vpop.f32.mrf.mxu0
  %v158 = vadd.f32 %v57, %v157
  %159 = vmatmul.f32.gmra.mxu0 %v69
  %v160 = vpop.f32.mrf.mxu0
  %v161 = vadd.f32 %v57, %v160
  %162 = vmatmul.f32.gmra.mxu0 %v72
  %v163 = vpop.f32.mrf.mxu0
  %v164 = vadd.f32 %v57, %v163
  %165 = vmatmul.f32.gmra.mxu0 %v75
  %v166 = vpop.f32.mrf.mxu0
  %v167 = vadd.f32 %v57, %v166
  %168 = vmatmul.f32.gmra.mxu0 %v78
  %v169 = vpop.f32.mrf.mxu0
  %v170 = vadd.f32 %v57, %v169
  %171 = vmatmul.f32.gmra.mxu0 %v81
  %v172 = vpop.f32.mrf.mxu0
  %v173 = vadd.f32 %v57, %v172
  %174 = vmatmul.f32.gmra.mxu0 %v84
  %v175 = vpop.f32.mrf.mxu0
  %v176 = vadd.f32 %v57, %v175
  %177 = vmatmul.f32.gmra.mxu0 %v87
  %v178 = vpop.f32.mrf.mxu0
  %v179 = vadd.f32 %v57, %v178
  %180 = vmatmul.f32.gmra.mxu0 %v90
  %v181 = vpop.f32.mrf.mxu0
  %v182 = vadd.f32 %v57, %v181
  %183 = vmatmul.f32.gmra.mxu0 %v93
  %v184 = vpop.f32.mrf.mxu0
  %v185 = vadd.f32 %v57, %v184
  %186 = vmatmul.f32.gmra.mxu0 %v96
  %v187 = vpop.f32.mrf.mxu0
  %v188 = vadd.f32 %v57, %v187
  %189 = vmatmul.f32.gmra.mxu0 %v99
  %v190 = vpop.f32.mrf.mxu0
  %v191 = vadd.f32 %v57, %v190
  %192 = vmatmul.f32.gmra.mxu0 %v102
  %v193 = vpop.f32.mrf.mxu0
  %v194 = vadd.f32 %v57, %v193
  %195 = vmatmul.f32.gmra.mxu0 %v105
  %v196 = vpop.f32.mrf.mxu0
  %v197 = vadd.f32 %v57, %v196
  %198 = vmatmul.f32.gmra.mxu0 %v108
  %v199 = vpop.f32.mrf.mxu0
  %v200 = vadd.f32 %v57, %v199
  %201 = vmatmul.f32.gmra.mxu0 %v111
  %v202 = vpop.f32.mrf.mxu0
  %v203 = vadd.f32 %v57, %v202
  %204 = vmatmul.f32.gmra.mxu0 %v114
  %v205 = vpop.f32.mrf.mxu0
  %v206 = vadd.f32 %v57, %v205
  %207 = vmatmul.f32.gmra.mxu0 %v117
  %v208 = vpop.f32.mrf.mxu0
  %v209 = vadd.f32 %v57, %v208
  %210 = vmatmul.f32.gmra.mxu0 %v120
  %v211 = vpop.f32.mrf.mxu0
  %v212 = vadd.f32 %v57, %v211
  %213 = vmatmul.f32.gmra.mxu0 %v123
  %v214 = vpop.f32.mrf.mxu0
  %v215 = vadd.f32 %v57, %v214
  %216 = vmatmul.f32.gmra.mxu0 %v126
  %v217 = vpop.f32.mrf.mxu0
  %v218 = vadd.f32 %v57, %v217
  %219 = vmatmul.f32.gmra.mxu0 %v129
  %v220 = vpop.f32.mrf.mxu0
  %v221 = vadd.f32 %v57, %v220
  %222 = vmatmul.f32.gmra.mxu0 %v132
  %v223 = vpop.f32.mrf.mxu0
  %v224 = vadd.f32 %v57, %v223
  %225 = vmatmul.f32.gmra.mxu0 %v135
  %v226 = vpop.f32.mrf.mxu0
  %v227 = vadd.f32 %v57, %v226
  %228 = vdwg.mxu0
  %229 = vmatpush.msra.mxu0 0.0
  %230 = vmatpush.msra.mxu0 0.0
  %231 = vmatpush.msra.mxu0 0.0
  %232 = vmatpush.msra.mxu0 0.0
  %233 = vmatpush.msra.mxu0 0.0
  %234 = vmatpush.msra.mxu0 0.0
  %235 = vmatpush.msra.mxu0 0.0
  %236 = vmatpush.msra.mxu0 0.0
  %237 = vmatpush.msra.mxu0 0.0
  %238 = vmatpush.msra.mxu0 0.0
  %239 = vmatpush.msra.mxu0 0.0
  %240 = vmatpush.msra.mxu0 0.0
  %241 = vmatpush.msra.mxu0 0.0
  %242 = vmatpush.msra.mxu0 0.0
  %243 = vmatpush.msra.mxu0 %v54
  %244 = vmatpush.msra.mxu0 %v52
  %245 = vmatmul.f32.gmra.mxu0 %v63
  %v246 = vpop.f32.mrf.mxu0
  %v247 = vadd.f32 %v58, %v246
  %248 = vmatmul.f32.gmra.mxu0 %v66
  %v249 = vpop.f32.mrf.mxu0
  %v250 = vadd.f32 %v58, %v249
  %251 = vmatmul.f32.gmra.mxu0 %v69
  %v252 = vpop.f32.mrf.mxu0
  %v253 = vadd.f32 %v58, %v252
  %254 = vmatmul.f32.gmra.mxu0 %v72
  %v255 = vpop.f32.mrf.mxu0
  %v256 = vadd.f32 %v58, %v255
  %257 = vmatmul.f32.gmra.mxu0 %v75
  %v258 = vpop.f32.mrf.mxu0
  %v259 = vadd.f32 %v58, %v258
  %260 = vmatmul.f32.gmra.mxu0 %v78
  %v261 = vpop.f32.mrf.mxu0
  %v262 = vadd.f32 %v58, %v261
  %263 = vmatmul.f32.gmra.mxu0 %v81
  %v264 = vpop.f32.mrf.mxu0
  %v265 = vadd.f32 %v58, %v264
  %266 = vmatmul.f32.gmra.mxu0 %v84
  %v267 = vpop.f32.mrf.mxu0
  %v268 = vadd.f32 %v58, %v267
  %269 = vmatmul.f32.gmra.mxu0 %v87
  %v270 = vpop.f32.mrf.mxu0
  %v271 = vadd.f32 %v58, %v270
  %272 = vmatmul.f32.gmra.mxu0 %v90
  %v273 = vpop.f32.mrf.mxu0
  %v274 = vadd.f32 %v58, %v273
  %275 = vmatmul.f32.gmra.mxu0 %v93
  %v276 = vpop.f32.mrf.mxu0
  %v277 = vadd.f32 %v58, %v276
  %278 = vmatmul.f32.gmra.mxu0 %v96
  %v279 = vpop.f32.mrf.mxu0
  %v280 = vadd.f32 %v58, %v279
  %281 = vmatmul.f32.gmra.mxu0 %v99
  %v282 = vpop.f32.mrf.mxu0
  %v283 = vadd.f32 %v58, %v282
  %284 = vmatmul.f32.gmra.mxu0 %v102
  %v285 = vpop.f32.mrf.mxu0
  %v286 = vadd.f32 %v58, %v285
  %287 = vmatmul.f32.gmra.mxu0 %v105
  %v288 = vpop.f32.mrf.mxu0
  %v289 = vadd.f32 %v58, %v288
  %290 = vmatmul.f32.gmra.mxu0 %v108
  %v291 = vpop.f32.mrf.mxu0
  %v292 = vadd.f32 %v58, %v291
  %293 = vmatmul.f32.gmra.mxu0 %v111
  %v294 = vpop.f32.mrf.mxu0
  %v295 = vadd.f32 %v58, %v294
  %296 = vmatmul.f32.gmra.mxu0 %v114
  %v297 = vpop.f32.mrf.mxu0
  %v298 = vadd.f32 %v58, %v297
  %299 = vmatmul.f32.gmra.mxu0 %v117
  %v300 = vpop.f32.mrf.mxu0
  %v301 = vadd.f32 %v58, %v300
  %302 = vmatmul.f32.gmra.mxu0 %v120
  %v303 = vpop.f32.mrf.mxu0
  %v304 = vadd.f32 %v58, %v303
  %305 = vmatmul.f32.gmra.mxu0 %v123
  %v306 = vpop.f32.mrf.mxu0
  %v307 = vadd.f32 %v58, %v306
  %308 = vmatmul.f32.gmra.mxu0 %v126
  %v309 = vpop.f32.mrf.mxu0
  %v310 = vadd.f32 %v58, %v309
  %311 = vmatmul.f32.gmra.mxu0 %v129
  %v312 = vpop.f32.mrf.mxu0
  %v313 = vadd.f32 %v58, %v312
  %314 = vmatmul.f32.gmra.mxu0 %v132
  %v315 = vpop.f32.mrf.mxu0
  %v316 = vadd.f32 %v58, %v315
  %317 = vmatmul.f32.gmra.mxu0 %v135
  %v318 = vpop.f32.mrf.mxu0
  %v319 = vadd.f32 %v58, %v318
  %320 = vdwg.mxu0
  %v321 = vmax.f32 %v155, 0.0
  %v322 = vmax.f32 %v247, 0.0
  %v323 = vmax.f32 %v158, 0.0
  %v324 = vmax.f32 %v250, 0.0
  %v325 = vmax.f32 %v161, 0.0
  %v326 = vmax.f32 %v253, 0.0
  %v327 = vmax.f32 %v164, 0.0
  %v328 = vmax.f32 %v256, 0.0
  %v329 = vmax.f32 %v167, 0.0
  %v330 = vmax.f32 %v259, 0.0
  %v331 = vmax.f32 %v170, 0.0
  %v332 = vmax.f32 %v262, 0.0
  %v333 = vmax.f32 %v173, 0.0
  %v334 = vmax.f32 %v265, 0.0
  %v335 = vmax.f32 %v176, 0.0
  %v336 = vmax.f32 %v268, 0.0
  %v337 = vmax.f32 %v179, 0.0
  %v338 = vmax.f32 %v271, 0.0
  %v339 = vmax.f32 %v182, 0.0
  %v340 = vmax.f32 %v274, 0.0
  %v341 = vmax.f32 %v185, 0.0
  %v342 = vmax.f32 %v277, 0.0
  %v343 = vmax.f32 %v188, 0.0
  %v344 = vmax.f32 %v280, 0.0
  %v345 = vmax.f32 %v191, 0.0
  %v346 = vmax.f32 %v283, 0.0
  %v347 = vmax.f32 %v194, 0.0
  %v348 = vmax.f32 %v286, 0.0
  %v349 = vmax.f32 %v197, 0.0
  %v350 = vmax.f32 %v289, 0.0
  %v351 = vmax.f32 %v200, 0.0
  %v352 = vmax.f32 %v292, 0.0
  %v353 = vmax.f32 %v203, 0.0
  %v354 = vmax.f32 %v295, 0.0
  %v355 = vmax.f32 %v206, 0.0
  %v356 = vmax.f32 %v298, 0.0
  %v357 = vmax.f32 %v209, 0.0
  %v358 = vmax.f32 %v301, 0.0
  %v359 = vmax.f32 %v212, 0.0
  %v360 = vmax.f32 %v304, 0.0
  %v361 = vmax.f32 %v215, 0.0
  %v362 = vmax.f32 %v307, 0.0
  %v363 = vmax.f32 %v218, 0.0
  %v364 = vmax.f32 %v310, 0.0
  %v365 = vmax.f32 %v221, 0.0
  %v366 = vmax.f32 %v313, 0.0
  %v367 = vmax.f32 %v224, 0.0
  %v368 = vmax.f32 %v316, 0.0
  %v369 = vmax.f32 %v227, 0.0
  %v370 = vmax.f32 %v319, 0.0
  %v371 = vld [vmem:[%s3] sm:$0xff]
  %v372 = vld [vmem:[%s3 + $0x8] sm:$0xff]
  %v373 = vld [vmem:[%s3 + $0x10] sm:$0xff]
  %v374 = vld [vmem:[%s3 + $0x18] sm:$0xff]
  %v375 = vld [vmem:[%s3 + $0x20] sm:$0xff]
  %v376 = vld [vmem:[%s3 + $0x28] sm:$0xff]
  %v377 = vld [vmem:[%s3 + $0x30] sm:$0xff]
  %v378 = vld [vmem:[%s3 + $0x38] sm:$0xff]
  %v379 = vld [vmem:[%s3 + $0x40] sm:$0xff]
  %v380 = vld [vmem:[%s3 + $0x48] sm:$0xff]
  %v381 = vld [vmem:[%s3 + $0x50] sm:$0xff]
  %v382 = vld [vmem:[%s3 + $0x58] sm:$0xff]
  %v383 = vld [vmem:[%s3 + $0x60] sm:$0xff]
  %v384 = vld [vmem:[%s3 + $0x68] sm:$0xff]
  %v385 = vld [vmem:[%s3 + $0x70] sm:$0xff]
  %v386 = vld [vmem:[%s3 + $0x78] sm:$0xff]
  %v387 = vld [vmem:[%s3 + $0x80] sm:$0xff]
  %v388 = vld [vmem:[%s3 + $0x88] sm:$0xff]
  %v389 = vld [vmem:[%s3 + $0x90] sm:$0xff]
  %v390 = vld [vmem:[%s3 + $0x98] sm:$0xff]
  %v391 = vld [vmem:[%s3 + $0xa0] sm:$0xff]
  %v392 = vld [vmem:[%s3 + $0xa8] sm:$0xff]
  %v393 = vld [vmem:[%s3 + $0xb0] sm:$0xff]
  %v394 = vld [vmem:[%s3 + $0xb8] sm:$0xff]
  %v395 = vld [vmem:[%s3 + $0xc0] sm:$0xff]
  %v396 = vld [vmem:[%s3 + $0xc8] sm:$0xff]
  %v397 = vld [vmem:[%s3 + $0xd0] sm:$0xff]
  %v398 = vld [vmem:[%s3 + $0xd8] sm:$0xff]
  %v399 = vld [vmem:[%s3 + $0xe0] sm:$0xff]
  %v400 = vld [vmem:[%s3 + $0xe8] sm:$0xff]
  %v401 = vld [vmem:[%s3 + $0xf0] sm:$0xff]
  %v402 = vld [vmem:[%s3 + $0xf8] sm:$0xff]
  %v403 = vld [vmem:[%s3 + $0x100] sm:$0xff]
  %v404 = vld [vmem:[%s3 + $0x108] sm:$0xff]
  %v405 = vld [vmem:[%s3 + $0x110] sm:$0xff]
  %v406 = vld [vmem:[%s3 + $0x118] sm:$0xff]
  %v407 = vld [vmem:[%s3 + $0x120] sm:$0xff]
  %v408 = vld [vmem:[%s3 + $0x128] sm:$0xff]
  %v409 = vld [vmem:[%s3 + $0x130] sm:$0xff]
  %v410 = vld [vmem:[%s3 + $0x138] sm:$0xff]
  %v411 = vld [vmem:[%s3 + $0x140] sm:$0xff]
  %v412 = vld [vmem:[%s3 + $0x148] sm:$0xff]
  %v413 = vld [vmem:[%s3 + $0x150] sm:$0xff]
  %v414 = vld [vmem:[%s3 + $0x158] sm:$0xff]
  %v415 = vld [vmem:[%s3 + $0x160] sm:$0xff]
  %v416 = vld [vmem:[%s3 + $0x168] sm:$0xff]
  %v417 = vld [vmem:[%s3 + $0x170] sm:$0xff]
  %v418 = vld [vmem:[%s3 + $0x178] sm:$0xff]
  %v419 = vld [vmem:[%s3 + $0x180] sm:$0xff]
  %v420 = vld [vmem:[%s3 + $0x188] sm:$0xff]
  %v421 = vld [vmem:[%s3 + $0x190] sm:$0xff]
  %v422 = vld [vmem:[%s3 + $0x198] sm:$0xff]
  %v423 = vld [vmem:[%s3 + $0x1a0] sm:$0xff]
  %v424 = vld [vmem:[%s3 + $0x1a8] sm:$0xff]
  %v425 = vld [vmem:[%s3 + $0x1b0] sm:$0xff]
  %v426 = vld [vmem:[%s3 + $0x1b8] sm:$0xff]
  %v427 = vld [vmem:[%s3 + $0x1c0] sm:$0xff]
  %v428 = vld [vmem:[%s3 + $0x1c8] sm:$0xff]
  %v429 = vld [vmem:[%s3 + $0x1d0] sm:$0xff]
  %v430 = vld [vmem:[%s3 + $0x1d8] sm:$0xff]
  %v431 = vld [vmem:[%s3 + $0x1e0] sm:$0xff]
  %v432 = vld [vmem:[%s3 + $0x1e8] sm:$0xff]
  %v433 = vld [vmem:[%s3 + $0x1f0] sm:$0xff]
  %v434 = vld [vmem:[%s3 + $0x1f8] sm:$0xff]
  %v435 = vld [vmem:[%s4] sm:$0x3]
  %v437 = vperm.slane %v435, 0
  %v438 = vperm.slane %v435, 1
  %441 = vmatpush.msra.mxu0 %v401
  %442 = vmatpush.msra.mxu0 %v399
  %443 = vmatpush.msra.mxu0 %v397
  %444 = vmatpush.msra.mxu0 %v395
  %445 = vmatpush.msra.mxu0 %v393
  %446 = vmatpush.msra.mxu0 %v391
  %447 = vmatpush.msra.mxu0 %v389
  %448 = vmatpush.msra.mxu0 %v387
  %449 = vmatpush.msra.mxu0 %v385
  %450 = vmatpush.msra.mxu0 %v383
  %451 = vmatpush.msra.mxu0 %v381
  %452 = vmatpush.msra.mxu0 %v379
  %453 = vmatpush.msra.mxu0 %v377
  %454 = vmatpush.msra.mxu0 %v375
  %455 = vmatpush.msra.mxu0 %v373
  %456 = vmatpush.msra.mxu0 %v371
  %457 = vmatmul.f32.gmra.mxu0 %v321
  %v458 = vpop.f32.mrf.mxu0
  %v459 = vadd.f32 %v437, %v458
  %460 = vmatmul.f32.gmra.mxu0 %v323
  %v461 = vpop.f32.mrf.mxu0
  %v462 = vadd.f32 %v437, %v461
  %463 = vmatmul.f32.gmra.mxu0 %v325
  %v464 = vpop.f32.mrf.mxu0
  %v465 = vadd.f32 %v437, %v464
  %466 = vmatmul.f32.gmra.mxu0 %v327
  %v467 = vpop.f32.mrf.mxu0
  %v468 = vadd.f32 %v437, %v467
  %469 = vmatmul.f32.gmra.mxu0 %v329
  %v470 = vpop.f32.mrf.mxu0
  %v471 = vadd.f32 %v437, %v470
  %472 = vmatmul.f32.gmra.mxu0 %v331
  %v473 = vpop.f32.mrf.mxu0
  %v474 = vadd.f32 %v437, %v473
  %475 = vmatmul.f32.gmra.mxu0 %v333
  %v476 = vpop.f32.mrf.mxu0
  %v477 = vadd.f32 %v437, %v476
  %478 = vmatmul.f32.gmra.mxu0 %v335
  %v479 = vpop.f32.mrf.mxu0
  %v480 = vadd.f32 %v437, %v479
  %481 = vmatmul.f32.gmra.mxu0 %v337
  %v482 = vpop.f32.mrf.mxu0
  %v483 = vadd.f32 %v437, %v482
  %484 = vmatmul.f32.gmra.mxu0 %v339
  %v485 = vpop.f32.mrf.mxu0
  %v486 = vadd.f32 %v437, %v485
  %487 = vmatmul.f32.gmra.mxu0 %v341
  %v488 = vpop.f32.mrf.mxu0
  %v489 = vadd.f32 %v437, %v488
  %490 = vmatmul.f32.gmra.mxu0 %v343
  %v491 = vpop.f32.mrf.mxu0
  %v492 = vadd.f32 %v437, %v491
  %493 = vmatmul.f32.gmra.mxu0 %v345
  %v494 = vpop.f32.mrf.mxu0
  %v495 = vadd.f32 %v437, %v494
  %496 = vmatmul.f32.gmra.mxu0 %v347
  %v497 = vpop.f32.mrf.mxu0
  %v498 = vadd.f32 %v437, %v497
  %499 = vmatmul.f32.gmra.mxu0 %v349
  %v500 = vpop.f32.mrf.mxu0
  %v501 = vadd.f32 %v437, %v500
  %502 = vmatmul.f32.gmra.mxu0 %v351
  %v503 = vpop.f32.mrf.mxu0
  %v504 = vadd.f32 %v437, %v503
  %505 = vmatmul.f32.gmra.mxu0 %v353
  %v506 = vpop.f32.mrf.mxu0
  %v507 = vadd.f32 %v437, %v506
  %508 = vmatmul.f32.gmra.mxu0 %v355
  %v509 = vpop.f32.mrf.mxu0
  %v510 = vadd.f32 %v437, %v509
  %511 = vmatmul.f32.gmra.mxu0 %v357
  %v512 = vpop.f32.mrf.mxu0
  %v513 = vadd.f32 %v437, %v512
  %514 = vmatmul.f32.gmra.mxu0 %v359
  %v515 = vpop.f32.mrf.mxu0
  %v516 = vadd.f32 %v437, %v515
  %517 = vmatmul.f32.gmra.mxu0 %v361
  %v518 = vpop.f32.mrf.mxu0
  %v519 = vadd.f32 %v437, %v518
  %520 = vmatmul.f32.gmra.mxu0 %v363
  %v521 = vpop.f32.mrf.mxu0
  %v522 = vadd.f32 %v437, %v521
  %523 = vmatmul.f32.gmra.mxu0 %v365
  %v524 = vpop.f32.mrf.mxu0
  %v525 = vadd.f32 %v437, %v524
  %526 = vmatmul.f32.gmra.mxu0 %v367
  %v527 = vpop.f32.mrf.mxu0
  %v528 = vadd.f32 %v437, %v527
  %529 = vmatmul.f32.gmra.mxu0 %v369
  %v530 = vpop.f32.mrf.mxu0
  %v531 = vadd.f32 %v437, %v530
  %532 = vdwg.mxu0
  %533 = vmatpush.msra.mxu0 %v433
  %534 = vmatpush.msra.mxu0 %v431
  %535 = vmatpush.msra.mxu0 %v429
  %536 = vmatpush.msra.mxu0 %v427
  %537 = vmatpush.msra.mxu0 %v425
  %538 = vmatpush.msra.mxu0 %v423
  %539 = vmatpush.msra.mxu0 %v421
  %540 = vmatpush.msra.mxu0 %v419
  %541 = vmatpush.msra.mxu0 %v417
  %542 = vmatpush.msra.mxu0 %v415
  %543 = vmatpush.msra.mxu0 %v413
  %544 = vmatpush.msra.mxu0 %v411
  %545 = vmatpush.msra.mxu0 %v409
  %546 = vmatpush.msra.mxu0 %v407
  %547 = vmatpush.msra.mxu0 %v405
  %548 = vmatpush.msra.mxu0 %v403
  %549 = vmatmul.f32.gmra.mxu0 %v322
  %v550 = vpop.f32.mrf.mxu0
  %v551 = vadd.f32 %v459, %v550
  %552 = vmatmul.f32.gmra.mxu0 %v324
  %v553 = vpop.f32.mrf.mxu0
  %v554 = vadd.f32 %v462, %v553
  %555 = vmatmul.f32.gmra.mxu0 %v326
  %v556 = vpop.f32.mrf.mxu0
  %v557 = vadd.f32 %v465, %v556
  %558 = vmatmul.f32.gmra.mxu0 %v328
  %v559 = vpop.f32.mrf.mxu0
  %v560 = vadd.f32 %v468, %v559
  %561 = vmatmul.f32.gmra.mxu0 %v330
  %v562 = vpop.f32.mrf.mxu0
  %v563 = vadd.f32 %v471, %v562
  %564 = vmatmul.f32.gmra.mxu0 %v332
  %v565 = vpop.f32.mrf.mxu0
  %v566 = vadd.f32 %v474, %v565
  %567 = vmatmul.f32.gmra.mxu0 %v334
  %v568 = vpop.f32.mrf.mxu0
  %v569 = vadd.f32 %v477, %v568
  %570 = vmatmul.f32.gmra.mxu0 %v336
  %v571 = vpop.f32.mrf.mxu0
  %v572 = vadd.f32 %v480, %v571
  %573 = vmatmul.f32.gmra.mxu0 %v338
  %v574 = vpop.f32.mrf.mxu0
  %v575 = vadd.f32 %v483, %v574
  %576 = vmatmul.f32.gmra.mxu0 %v340
  %v577 = vpop.f32.mrf.mxu0
  %v578 = vadd.f32 %v486, %v577
  %579 = vmatmul.f32.gmra.mxu0 %v342
  %v580 = vpop.f32.mrf.mxu0
  %v581 = vadd.f32 %v489, %v580
  %582 = vmatmul.f32.gmra.mxu0 %v344
  %v583 = vpop.f32.mrf.mxu0
  %v584 = vadd.f32 %v492, %v583
  %585 = vmatmul.f32.gmra.mxu0 %v346
  %v586 = vpop.f32.mrf.mxu0
  %v587 = vadd.f32 %v495, %v586
  %588 = vmatmul.f32.gmra.mxu0 %v348
  %v589 = vpop.f32.mrf.mxu0
  %v590 = vadd.f32 %v498, %v589
  %591 = vmatmul.f32.gmra.mxu0 %v350
  %v592 = vpop.f32.mrf.mxu0
  %v593 = vadd.f32 %v501, %v592
  %594 = vmatmul.f32.gmra.mxu0 %v352
  %v595 = vpop.f32.mrf.mxu0
  %v596 = vadd.f32 %v504, %v595
  %597 = vmatmul.f32.gmra.mxu0 %v354
  %v598 = vpop.f32.mrf.mxu0
  %v599 = vadd.f32 %v507, %v598
  %600 = vmatmul.f32.gmra.mxu0 %v356
  %v601 = vpop.f32.mrf.mxu0
  %v602 = vadd.f32 %v510, %v601
  %603 = vmatmul.f32.gmra.mxu0 %v358
  %v604 = vpop.f32.mrf.mxu0
  %v605 = vadd.f32 %v513, %v604
  %606 = vmatmul.f32.gmra.mxu0 %v360
  %v607 = vpop.f32.mrf.mxu0
  %v608 = vadd.f32 %v516, %v607
  %609 = vmatmul.f32.gmra.mxu0 %v362
  %v610 = vpop.f32.mrf.mxu0
  %v611 = vadd.f32 %v519, %v610
  %612 = vmatmul.f32.gmra.mxu0 %v364
  %v613 = vpop.f32.mrf.mxu0
  %v614 = vadd.f32 %v522, %v613
  %615 = vmatmul.f32.gmra.mxu0 %v366
  %v616 = vpop.f32.mrf.mxu0
  %v617 = vadd.f32 %v525, %v616
  %618 = vmatmul.f32.gmra.mxu0 %v368
  %v619 = vpop.f32.mrf.mxu0
  %v620 = vadd.f32 %v528, %v619
  %621 = vmatmul.f32.gmra.mxu0 %v370
  %v622 = vpop.f32.mrf.mxu0
  %v623 = vadd.f32 %v531, %v622
  %624 = vdwg.mxu0
  %625 = vmatpush.msra.mxu0 %v402
  %626 = vmatpush.msra.mxu0 %v400
  %627 = vmatpush.msra.mxu0 %v398
  %628 = vmatpush.msra.mxu0 %v396
  %629 = vmatpush.msra.mxu0 %v394
  %630 = vmatpush.msra.mxu0 %v392
  %631 = vmatpush.msra.mxu0 %v390
  %632 = vmatpush.msra.mxu0 %v388
  %633 = vmatpush.msra.mxu0 %v386
  %634 = vmatpush.msra.mxu0 %v384
  %635 = vmatpush.msra.mxu0 %v382
  %636 = vmatpush.msra.mxu0 %v380
  %637 = vmatpush.msra.mxu0 %v378
  %638 = vmatpush.msra.mxu0 %v376
  %639 = vmatpush.msra.mxu0 %v374
  %640 = vmatpush.msra.mxu0 %v372
  %641 = vmatmul.f32.gmra.mxu0 %v321
  %v642 = vpop.f32.mrf.mxu0
  %v643 = vadd.f32 %v438, %v642
  %644 = vmatmul.f32.gmra.mxu0 %v323
  %v645 = vpop.f32.mrf.mxu0
  %v646 = vadd.f32 %v438, %v645
  %647 = vmatmul.f32.gmra.mxu0 %v325
  %v648 = vpop.f32.mrf.mxu0
  %v649 = vadd.f32 %v438, %v648
  %650 = vmatmul.f32.gmra.mxu0 %v327
  %v651 = vpop.f32.mrf.mxu0
  %v652 = vadd.f32 %v438, %v651
  %653 = vmatmul.f32.gmra.mxu0 %v329
  %v654 = vpop.f32.mrf.mxu0
  %v655 = vadd.f32 %v438, %v654
  %656 = vmatmul.f32.gmra.mxu0 %v331
  %v657 = vpop.f32.mrf.mxu0
  %v658 = vadd.f32 %v438, %v657
  %659 = vmatmul.f32.gmra.mxu0 %v333
  %v660 = vpop.f32.mrf.mxu0
  %v661 = vadd.f32 %v438, %v660
  %662 = vmatmul.f32.gmra.mxu0 %v335
  %v663 = vpop.f32.mrf.mxu0
  %v664 = vadd.f32 %v438, %v663
  %665 = vmatmul.f32.gmra.mxu0 %v337
  %v666 = vpop.f32.mrf.mxu0
  %v667 = vadd.f32 %v438, %v666
  %668 = vmatmul.f32.gmra.mxu0 %v339
  %v669 = vpop.f32.mrf.mxu0
  %v670 = vadd.f32 %v438, %v669
  %671 = vmatmul.f32.gmra.mxu0 %v341
  %v672 = vpop.f32.mrf.mxu0
  %v673 = vadd.f32 %v438, %v672
  %674 = vmatmul.f32.gmra.mxu0 %v343
  %v675 = vpop.f32.mrf.mxu0
  %v676 = vadd.f32 %v438, %v675
  %677 = vmatmul.f32.gmra.mxu0 %v345
  %v678 = vpop.f32.mrf.mxu0
  %v679 = vadd.f32 %v438, %v678
  %680 = vmatmul.f32.gmra.mxu0 %v347
  %v681 = vpop.f32.mrf.mxu0
  %v682 = vadd.f32 %v438, %v681
  %683 = vmatmul.f32.gmra.mxu0 %v349
  %v684 = vpop.f32.mrf.mxu0
  %v685 = vadd.f32 %v438, %v684
  %686 = vmatmul.f32.gmra.mxu0 %v351
  %v687 = vpop.f32.mrf.mxu0
  %v688 = vadd.f32 %v438, %v687
  %689 = vmatmul.f32.gmra.mxu0 %v353
  %v690 = vpop.f32.mrf.mxu0
  %v691 = vadd.f32 %v438, %v690
  %692 = vmatmul.f32.gmra.mxu0 %v355
  %v693 = vpop.f32.mrf.mxu0
  %v694 = vadd.f32 %v438, %v693
  %695 = vmatmul.f32.gmra.mxu0 %v357
  %v696 = vpop.f32.mrf.mxu0
  %v697 = vadd.f32 %v438, %v696
  %698 = vmatmul.f32.gmra.mxu0 %v359
  %v699 = vpop.f32.mrf.mxu0
  %v700 = vadd.f32 %v438, %v699
  %701 = vmatmul.f32.gmra.mxu0 %v361
  %v702 = vpop.f32.mrf.mxu0
  %v703 = vadd.f32 %v438, %v702
  %704 = vmatmul.f32.gmra.mxu0 %v363
  %v705 = vpop.f32.mrf.mxu0
  %v706 = vadd.f32 %v438, %v705
  %707 = vmatmul.f32.gmra.mxu0 %v365
  %v708 = vpop.f32.mrf.mxu0
  %v709 = vadd.f32 %v438, %v708
  %710 = vmatmul.f32.gmra.mxu0 %v367
  %v711 = vpop.f32.mrf.mxu0
  %v712 = vadd.f32 %v438, %v711
  %713 = vmatmul.f32.gmra.mxu0 %v369
  %v714 = vpop.f32.mrf.mxu0
  %v715 = vadd.f32 %v438, %v714
  %716 = vdwg.mxu0
  %717 = vmatpush.msra.mxu0 %v434
  %718 = vmatpush.msra.mxu0 %v432
  %719 = vmatpush.msra.mxu0 %v430
  %720 = vmatpush.msra.mxu0 %v428
  %721 = vmatpush.msra.mxu0 %v426
  %722 = vmatpush.msra.mxu0 %v424
  %723 = vmatpush.msra.mxu0 %v422
  %724 = vmatpush.msra.mxu0 %v420
  %725 = vmatpush.msra.mxu0 %v418
  %726 = vmatpush.msra.mxu0 %v416
  %727 = vmatpush.msra.mxu0 %v414
  %728 = vmatpush.msra.mxu0 %v412
  %729 = vmatpush.msra.mxu0 %v410
  %730 = vmatpush.msra.mxu0 %v408
  %731 = vmatpush.msra.mxu0 %v406
  %732 = vmatpush.msra.mxu0 %v404
  %733 = vmatmul.f32.gmra.mxu0 %v322
  %v734 = vpop.f32.mrf.mxu0
  %v735 = vadd.f32 %v643, %v734
  %736 = vmatmul.f32.gmra.mxu0 %v324
  %v737 = vpop.f32.mrf.mxu0
  %v738 = vadd.f32 %v646, %v737
  %739 = vmatmul.f32.gmra.mxu0 %v326
  %v740 = vpop.f32.mrf.mxu0
  %v741 = vadd.f32 %v649, %v740
  %742 = vmatmul.f32.gmra.mxu0 %v328
  %v743 = vpop.f32.mrf.mxu0
  %v744 = vadd.f32 %v652, %v743
  %745 = vmatmul.f32.gmra.mxu0 %v330
  %v746 = vpop.f32.mrf.mxu0
  %v747 = vadd.f32 %v655, %v746
  %748 = vmatmul.f32.gmra.mxu0 %v332
  %v749 = vpop.f32.mrf.mxu0
  %v750 = vadd.f32 %v658, %v749
  %751 = vmatmul.f32.gmra.mxu0 %v334
  %v752 = vpop.f32.mrf.mxu0
  %v753 = vadd.f32 %v661, %v752
  %754 = vmatmul.f32.gmra.mxu0 %v336
  %v755 = vpop.f32.mrf.mxu0
  %v756 = vadd.f32 %v664, %v755
  %757 = vmatmul.f32.gmra.mxu0 %v338
  %v758 = vpop.f32.mrf.mxu0
  %v759 = vadd.f32 %v667, %v758
  %760 = vmatmul.f32.gmra.mxu0 %v340
  %v761 = vpop.f32.mrf.mxu0
  %v762 = vadd.f32 %v670, %v761
  %763 = vmatmul.f32.gmra.mxu0 %v342
  %v764 = vpop.f32.mrf.mxu0
  %v765 = vadd.f32 %v673, %v764
  %766 = vmatmul.f32.gmra.mxu0 %v344
  %v767 = vpop.f32.mrf.mxu0
  %v768 = vadd.f32 %v676, %v767
  %769 = vmatmul.f32.gmra.mxu0 %v346
  %v770 = vpop.f32.mrf.mxu0
  %v771 = vadd.f32 %v679, %v770
  %772 = vmatmul.f32.gmra.mxu0 %v348
  %v773 = vpop.f32.mrf.mxu0
  %v774 = vadd.f32 %v682, %v773
  %775 = vmatmul.f32.gmra.mxu0 %v350
  %v776 = vpop.f32.mrf.mxu0
  %v777 = vadd.f32 %v685, %v776
  %778 = vmatmul.f32.gmra.mxu0 %v352
  %v779 = vpop.f32.mrf.mxu0
  %v780 = vadd.f32 %v688, %v779
  %781 = vmatmul.f32.gmra.mxu0 %v354
  %v782 = vpop.f32.mrf.mxu0
  %v783 = vadd.f32 %v691, %v782
  %784 = vmatmul.f32.gmra.mxu0 %v356
  %v785 = vpop.f32.mrf.mxu0
  %v786 = vadd.f32 %v694, %v785
  %787 = vmatmul.f32.gmra.mxu0 %v358
  %v788 = vpop.f32.mrf.mxu0
  %v789 = vadd.f32 %v697, %v788
  %790 = vmatmul.f32.gmra.mxu0 %v360
  %v791 = vpop.f32.mrf.mxu0
  %v792 = vadd.f32 %v700, %v791
  %793 = vmatmul.f32.gmra.mxu0 %v362
  %v794 = vpop.f32.mrf.mxu0
  %v795 = vadd.f32 %v703, %v794
  %796 = vmatmul.f32.gmra.mxu0 %v364
  %v797 = vpop.f32.mrf.mxu0
  %v798 = vadd.f32 %v706, %v797
  %799 = vmatmul.f32.gmra.mxu0 %v366
  %v800 = vpop.f32.mrf.mxu0
  %v801 = vadd.f32 %v709, %v800
  %802 = vmatmul.f32.gmra.mxu0 %v368
  %v803 = vpop.f32.mrf.mxu0
  %v804 = vadd.f32 %v712, %v803
  %805 = vmatmul.f32.gmra.mxu0 %v370
  %v806 = vpop.f32.mrf.mxu0
  %v807 = vadd.f32 %v715, %v806
  %808 = vdwg.mxu0
  %v809 = vmax.f32 %v551, 0.0
  %v810 = vmax.f32 %v735, 0.0
  %v811 = vmax.f32 %v554, 0.0
  %v812 = vmax.f32 %v738, 0.0
  %v813 = vmax.f32 %v557, 0.0
  %v814 = vmax.f32 %v741, 0.0
  %v815 = vmax.f32 %v560, 0.0
  %v816 = vmax.f32 %v744, 0.0
  %v817 = vmax.f32 %v563, 0.0
  %v818 = vmax.f32 %v747, 0.0
  %v819 = vmax.f32 %v566, 0.0
  %v820 = vmax.f32 %v750, 0.0
  %v821 = vmax.f32 %v569, 0.0
  %v822 = vmax.f32 %v753, 0.0
  %v823 = vmax.f32 %v572, 0.0
  %v824 = vmax.f32 %v756, 0.0
  %v825 = vmax.f32 %v575, 0.0
  %v826 = vmax.f32 %v759, 0.0
  %v827 = vmax.f32 %v578, 0.0
  %v828 = vmax.f32 %v762, 0.0
  %v829 = vmax.f32 %v581, 0.0
  %v830 = vmax.f32 %v765, 0.0
  %v831 = vmax.f32 %v584, 0.0
  %v832 = vmax.f32 %v768, 0.0
  %v833 = vmax.f32 %v587, 0.0
  %v834 = vmax.f32 %v771, 0.0
  %v835 = vmax.f32 %v590, 0.0
  %v836 = vmax.f32 %v774, 0.0
  %v837 = vmax.f32 %v593, 0.0
  %v838 = vmax.f32 %v777, 0.0
  %v839 = vmax.f32 %v596, 0.0
  %v840 = vmax.f32 %v780, 0.0
  %v841 = vmax.f32 %v599, 0.0
  %v842 = vmax.f32 %v783, 0.0
  %v843 = vmax.f32 %v602, 0.0
  %v844 = vmax.f32 %v786, 0.0
  %v845 = vmax.f32 %v605, 0.0
  %v846 = vmax.f32 %v789, 0.0
  %v847 = vmax.f32 %v608, 0.0
  %v848 = vmax.f32 %v792, 0.0
  %v849 = vmax.f32 %v611, 0.0
  %v850 = vmax.f32 %v795, 0.0
  %v851 = vmax.f32 %v614, 0.0
  %v852 = vmax.f32 %v798, 0.0
  %v853 = vmax.f32 %v617, 0.0
  %v854 = vmax.f32 %v801, 0.0
  %v855 = vmax.f32 %v620, 0.0
  %v856 = vmax.f32 %v804, 0.0
  %v857 = vmax.f32 %v623, 0.0
  %v858 = vmax.f32 %v807, 0.0
  %v859 = vld [vmem:[%s5] sm:$0xff]
  %v860 = vld [vmem:[%s5 + $0x8] sm:$0xff]
  %v861 = vld [vmem:[%s5 + $0x10] sm:$0xff]
  %v862 = vld [vmem:[%s5 + $0x18] sm:$0xff]
  %v863 = vld [vmem:[%s5 + $0x20] sm:$0xff]
  %v864 = vld [vmem:[%s5 + $0x28] sm:$0xff]
  %v865 = vld [vmem:[%s5 + $0x30] sm:$0xff]
  %v866 = vld [vmem:[%s5 + $0x38] sm:$0xff]
  %v867 = vld [vmem:[%s5 + $0x40] sm:$0xff]
  %v868 = vld [vmem:[%s5 + $0x48] sm:$0xff]
  %v869 = vld [vmem:[%s5 + $0x50] sm:$0xff]
  %v870 = vld [vmem:[%s5 + $0x58] sm:$0xff]
  %v871 = vld [vmem:[%s5 + $0x60] sm:$0xff]
  %v872 = vld [vmem:[%s5 + $0x68] sm:$0xff]
  %v873 = vld [vmem:[%s5 + $0x70] sm:$0xff]
  %v874 = vld [vmem:[%s5 + $0x78] sm:$0xff]
  %v875 = vld [vmem:[%s5 + $0x80] sm:$0xff]
  %v876 = vld [vmem:[%s5 + $0x88] sm:$0xff]
  %v877 = vld [vmem:[%s5 + $0x90] sm:$0xff]
  %v878 = vld [vmem:[%s5 + $0x98] sm:$0xff]
  %v879 = vld [vmem:[%s5 + $0xa0] sm:$0xff]
  %v880 = vld [vmem:[%s5 + $0xa8] sm:$0xff]
  %v881 = vld [vmem:[%s5 + $0xb0] sm:$0xff]
  %v882 = vld [vmem:[%s5 + $0xb8] sm:$0xff]
  %v883 = vld [vmem:[%s5 + $0xc0] sm:$0xff]
  %v884 = vld [vmem:[%s5 + $0xc8] sm:$0xff]
  %v885 = vld [vmem:[%s5 + $0xd0] sm:$0xff]
  %v886 = vld [vmem:[%s5 + $0xd8] sm:$0xff]
  %v887 = vld [vmem:[%s5 + $0xe0] sm:$0xff]
  %v888 = vld [vmem:[%s5 + $0xe8] sm:$0xff]
  %v889 = vld [vmem:[%s5 + $0xf0] sm:$0xff]
  %v890 = vld [vmem:[%s5 + $0xf8] sm:$0xff]
  %v891 = vld [vmem:[%s6] sm:$0x1]
  %v893 = vperm.slane %v891, 0
  %895 = vmatpush.msra.mxu0 %v874
  %896 = vmatpush.msra.mxu0 %v873
  %897 = vmatpush.msra.mxu0 %v872
  %898 = vmatpush.msra.mxu0 %v871
  %899 = vmatpush.msra.mxu0 %v870
  %900 = vmatpush.msra.mxu0 %v869
  %901 = vmatpush.msra.mxu0 %v868
  %902 = vmatpush.msra.mxu0 %v867
  %903 = vmatpush.msra.mxu0 %v866
  %904 = vmatpush.msra.mxu0 %v865
  %905 = vmatpush.msra.mxu0 %v864
  %906 = vmatpush.msra.mxu0 %v863
  %907 = vmatpush.msra.mxu0 %v862
  %908 = vmatpush.msra.mxu0 %v861
  %909 = vmatpush.msra.mxu0 %v860
  %910 = vmatpush.msra.mxu0 %v859
  %911 = vmatmul.f32.gmra.mxu0 %v809
  %v912 = vpop.f32.mrf.mxu0
  %v913 = vadd.f32 %v893, %v912
  %914 = vmatmul.f32.gmra.mxu0 %v811
  %v915 = vpop.f32.mrf.mxu0
  %v916 = vadd.f32 %v893, %v915
  %917 = vmatmul.f32.gmra.mxu0 %v813
  %v918 = vpop.f32.mrf.mxu0
  %v919 = vadd.f32 %v893, %v918
  %920 = vmatmul.f32.gmra.mxu0 %v815
  %v921 = vpop.f32.mrf.mxu0
  %v922 = vadd.f32 %v893, %v921
  %923 = vmatmul.f32.gmra.mxu0 %v817
  %v924 = vpop.f32.mrf.mxu0
  %v925 = vadd.f32 %v893, %v924
  %926 = vmatmul.f32.gmra.mxu0 %v819
  %v927 = vpop.f32.mrf.mxu0
  %v928 = vadd.f32 %v893, %v927
  %929 = vmatmul.f32.gmra.mxu0 %v821
  %v930 = vpop.f32.mrf.mxu0
  %v931 = vadd.f32 %v893, %v930
  %932 = vmatmul.f32.gmra.mxu0 %v823
  %v933 = vpop.f32.mrf.mxu0
  %v934 = vadd.f32 %v893, %v933
  %935 = vmatmul.f32.gmra.mxu0 %v825
  %v936 = vpop.f32.mrf.mxu0
  %v937 = vadd.f32 %v893, %v936
  %938 = vmatmul.f32.gmra.mxu0 %v827
  %v939 = vpop.f32.mrf.mxu0
  %v940 = vadd.f32 %v893, %v939
  %941 = vmatmul.f32.gmra.mxu0 %v829
  %v942 = vpop.f32.mrf.mxu0
  %v943 = vadd.f32 %v893, %v942
  %944 = vmatmul.f32.gmra.mxu0 %v831
  %v945 = vpop.f32.mrf.mxu0
  %v946 = vadd.f32 %v893, %v945
  %947 = vmatmul.f32.gmra.mxu0 %v833
  %v948 = vpop.f32.mrf.mxu0
  %v949 = vadd.f32 %v893, %v948
  %950 = vmatmul.f32.gmra.mxu0 %v835
  %v951 = vpop.f32.mrf.mxu0
  %v952 = vadd.f32 %v893, %v951
  %953 = vmatmul.f32.gmra.mxu0 %v837
  %v954 = vpop.f32.mrf.mxu0
  %v955 = vadd.f32 %v893, %v954
  %956 = vmatmul.f32.gmra.mxu0 %v839
  %v957 = vpop.f32.mrf.mxu0
  %v958 = vadd.f32 %v893, %v957
  %959 = vmatmul.f32.gmra.mxu0 %v841
  %v960 = vpop.f32.mrf.mxu0
  %v961 = vadd.f32 %v893, %v960
  %962 = vmatmul.f32.gmra.mxu0 %v843
  %v963 = vpop.f32.mrf.mxu0
  %v964 = vadd.f32 %v893, %v963
  %965 = vmatmul.f32.gmra.mxu0 %v845
  %v966 = vpop.f32.mrf.mxu0
  %v967 = vadd.f32 %v893, %v966
  %968 = vmatmul.f32.gmra.mxu0 %v847
  %v969 = vpop.f32.mrf.mxu0
  %v970 = vadd.f32 %v893, %v969
  %971 = vmatmul.f32.gmra.mxu0 %v849
  %v972 = vpop.f32.mrf.mxu0
  %v973 = vadd.f32 %v893, %v972
  %974 = vmatmul.f32.gmra.mxu0 %v851
  %v975 = vpop.f32.mrf.mxu0
  %v976 = vadd.f32 %v893, %v975
  %977 = vmatmul.f32.gmra.mxu0 %v853
  %v978 = vpop.f32.mrf.mxu0
  %v979 = vadd.f32 %v893, %v978
  %980 = vmatmul.f32.gmra.mxu0 %v855
  %v981 = vpop.f32.mrf.mxu0
  %v982 = vadd.f32 %v893, %v981
  %983 = vmatmul.f32.gmra.mxu0 %v857
  %v984 = vpop.f32.mrf.mxu0
  %v985 = vadd.f32 %v893, %v984
  %986 = vdwg.mxu0
  %987 = vmatpush.msra.mxu0 %v890
  %988 = vmatpush.msra.mxu0 %v889
  %989 = vmatpush.msra.mxu0 %v888
  %990 = vmatpush.msra.mxu0 %v887
  %991 = vmatpush.msra.mxu0 %v886
  %992 = vmatpush.msra.mxu0 %v885
  %993 = vmatpush.msra.mxu0 %v884
  %994 = vmatpush.msra.mxu0 %v883
  %995 = vmatpush.msra.mxu0 %v882
  %996 = vmatpush.msra.mxu0 %v881
  %997 = vmatpush.msra.mxu0 %v880
  %998 = vmatpush.msra.mxu0 %v879
  %999 = vmatpush.msra.mxu0 %v878
  %1000 = vmatpush.msra.mxu0 %v877
  %1001 = vmatpush.msra.mxu0 %v876
  %1002 = vmatpush.msra.mxu0 %v875
  %1003 = vmatmul.f32.gmra.mxu0 %v810
  %v1004 = vpop.f32.mrf.mxu0
  %v1005 = vadd.f32 %v913, %v1004
  %1006 = vmatmul.f32.gmra.mxu0 %v812
  %v1007 = vpop.f32.mrf.mxu0
  %v1008 = vadd.f32 %v916, %v1007
  %1009 = vmatmul.f32.gmra.mxu0 %v814
  %v1010 = vpop.f32.mrf.mxu0
  %v1011 = vadd.f32 %v919, %v1010
  %1012 = vmatmul.f32.gmra.mxu0 %v816
  %v1013 = vpop.f32.mrf.mxu0
  %v1014 = vadd.f32 %v922, %v1013
  %1015 = vmatmul.f32.gmra.mxu0 %v818
  %v1016 = vpop.f32.mrf.mxu0
  %v1017 = vadd.f32 %v925, %v1016
  %1018 = vmatmul.f32.gmra.mxu0 %v820
  %v1019 = vpop.f32.mrf.mxu0
  %v1020 = vadd.f32 %v928, %v1019
  %1021 = vmatmul.f32.gmra.mxu0 %v822
  %v1022 = vpop.f32.mrf.mxu0
  %v1023 = vadd.f32 %v931, %v1022
  %1024 = vmatmul.f32.gmra.mxu0 %v824
  %v1025 = vpop.f32.mrf.mxu0
  %v1026 = vadd.f32 %v934, %v1025
  %1027 = vmatmul.f32.gmra.mxu0 %v826
  %v1028 = vpop.f32.mrf.mxu0
  %v1029 = vadd.f32 %v937, %v1028
  %1030 = vmatmul.f32.gmra.mxu0 %v828
  %v1031 = vpop.f32.mrf.mxu0
  %v1032 = vadd.f32 %v940, %v1031
  %1033 = vmatmul.f32.gmra.mxu0 %v830
  %v1034 = vpop.f32.mrf.mxu0
  %v1035 = vadd.f32 %v943, %v1034
  %1036 = vmatmul.f32.gmra.mxu0 %v832
  %v1037 = vpop.f32.mrf.mxu0
  %v1038 = vadd.f32 %v946, %v1037
  %1039 = vmatmul.f32.gmra.mxu0 %v834
  %v1040 = vpop.f32.mrf.mxu0
  %v1041 = vadd.f32 %v949, %v1040
  %1042 = vmatmul.f32.gmra.mxu0 %v836
  %v1043 = vpop.f32.mrf.mxu0
  %v1044 = vadd.f32 %v952, %v1043
  %1045 = vmatmul.f32.gmra.mxu0 %v838
  %v1046 = vpop.f32.mrf.mxu0
  %v1047 = vadd.f32 %v955, %v1046
  %1048 = vmatmul.f32.gmra.mxu0 %v840
  %v1049 = vpop.f32.mrf.mxu0
  %v1050 = vadd.f32 %v958, %v1049
  %1051 = vmatmul.f32.gmra.mxu0 %v842
  %v1052 = vpop.f32.mrf.mxu0
  %v1053 = vadd.f32 %v961, %v1052
  %1054 = vmatmul.f32.gmra.mxu0 %v844
  %v1055 = vpop.f32.mrf.mxu0
  %v1056 = vadd.f32 %v964, %v1055
  %1057 = vmatmul.f32.gmra.mxu0 %v846
  %v1058 = vpop.f32.mrf.mxu0
  %v1059 = vadd.f32 %v967, %v1058
  %1060 = vmatmul.f32.gmra.mxu0 %v848
  %v1061 = vpop.f32.mrf.mxu0
  %v1062 = vadd.f32 %v970, %v1061
  %1063 = vmatmul.f32.gmra.mxu0 %v850
  %v1064 = vpop.f32.mrf.mxu0
  %v1065 = vadd.f32 %v973, %v1064
  %1066 = vmatmul.f32.gmra.mxu0 %v852
  %v1067 = vpop.f32.mrf.mxu0
  %v1068 = vadd.f32 %v976, %v1067
  %1069 = vmatmul.f32.gmra.mxu0 %v854
  %v1070 = vpop.f32.mrf.mxu0
  %v1071 = vadd.f32 %v979, %v1070
  %1072 = vmatmul.f32.gmra.mxu0 %v856
  %v1073 = vpop.f32.mrf.mxu0
  %v1074 = vadd.f32 %v982, %v1073
  %1075 = vmatmul.f32.gmra.mxu0 %v858
  %v1076 = vpop.f32.mrf.mxu0
  %v1077 = vadd.f32 %v985, %v1076
  %1078 = vdwg.mxu0
  %1079 = vst [vmem:[%s7] sm:$0xff] %v1005
  %1080 = vst [vmem:[%s7 + $0x8] sm:$0xff] %v1008
  %1081 = vst [vmem:[%s7 + $0x10] sm:$0xff] %v1011
  %1082 = vst [vmem:[%s7 + $0x18] sm:$0xff] %v1014
  %1083 = vst [vmem:[%s7 + $0x20] sm:$0xff] %v1017
  %1084 = vst [vmem:[%s7 + $0x28] sm:$0xff] %v1020
  %1085 = vst [vmem:[%s7 + $0x30] sm:$0xff] %v1023
  %1086 = vst [vmem:[%s7 + $0x38] sm:$0xff] %v1026
  %1087 = vst [vmem:[%s7 + $0x40] sm:$0xff] %v1029
  %1088 = vst [vmem:[%s7 + $0x48] sm:$0xff] %v1032
  %1089 = vst [vmem:[%s7 + $0x50] sm:$0xff] %v1035
  %1090 = vst [vmem:[%s7 + $0x58] sm:$0xff] %v1038
  %1091 = vst [vmem:[%s7 + $0x60] sm:$0xff] %v1041
  %1092 = vst [vmem:[%s7 + $0x68] sm:$0xff] %v1044
  %1093 = vst [vmem:[%s7 + $0x70] sm:$0xff] %v1047
  %1094 = vst [vmem:[%s7 + $0x78] sm:$0xff] %v1050
  %1095 = vst [vmem:[%s7 + $0x80] sm:$0xff] %v1053
  %1096 = vst [vmem:[%s7 + $0x88] sm:$0xff] %v1056
  %1097 = vst [vmem:[%s7 + $0x90] sm:$0xff] %v1059
  %1098 = vst [vmem:[%s7 + $0x98] sm:$0xff] %v1062
  %1099 = vst [vmem:[%s7 + $0xa0] sm:$0xff] %v1065
  %1100 = vst [vmem:[%s7 + $0xa8] sm:$0xff] %v1068
  %1101 = vst [vmem:[%s7 + $0xb0] sm:$0xff] %v1071
  %1102 = vst [vmem:[%s7 + $0xb8] sm:$0xff] %v1074
  %1103 = vst [vmem:[%s7 + $0xc0] sm:$0xff] %v1077
  // Predicated region
  $region30: #{actor_forward.1} parent=0 // pred_check
    _
  $region31: #{actor_forward.1} parent=0 // pred_check_branch
    %1105 = sbr.rel (0) target = $region33
  $region32: #{actor_forward.1} parent=0 // pred_region
    _
  $region33: #{actor_forward.1} parent=0 // pred_fallthru
    _
  // Predicated region
  $region34: #{actor_forward.1} parent=0 // pred_check
    _
  $region35: #{actor_forward.1} parent=0 // pred_check_branch
    %1107 = sbr.rel (0) target = $region37
  $region36: #{actor_forward.1} parent=0 // pred_region
    _
  $region37: #{actor_forward.1} parent=0 // pred_fallthru
    _

</llo_original>
